<compile_context>
chip_gen: v6e
topology: v6e:2x2x1
jax: 0.10.0
libtpu: 0.0.40
codegen_flags: <defaults>
</compile_context>

<pallas_src>
import math

import jax
import jax.numpy as jnp
from jax.experimental import pallas as pl
from jax.experimental.pallas import tpu as pltpu


# VPU (slab) path is used only while it stays memory-bound; beyond this the
# contraction goes to the MXU.
_VPU_MAX_CIN = 32
_VPU_MAX_COUT = 64
_VPU_MAX_PROD = 512


def _cdiv(a, b):
    return -(-a // b)


def _round_up(a, b):
    return _cdiv(a, b) * b


def _sublane_pack(dtype):
    # rows per physical (8, 128) VMEM tile: 8 for f32, 16 for bf16, 32 for int8
    return 8 * max(1, 4 // jnp.dtype(dtype).itemsize)


def _vmem_budget():
    """Generation-aware VMEM numbers.

    Returns (budget_bytes for our double-buffered blocks, scoped-limit cap).
    v5e/v6e have 128 MiB physical VMEM, v7x only 64 MiB per TensorCore; the
    conservative fallback assumes the v7x number.
    """
    phys = 64 * 1024 * 1024
    try:
        phys = int(pltpu.get_tpu_info().vmem_capacity_bytes)
    except Exception:
        pass
    limit_cap = min(int(phys * 3 // 4), 96 * 1024 * 1024)
    budget = limit_cap // 2          # headroom for compiler scratch / pipeline state
    return budget, limit_cap


# ---------------------------------------------------------------------------
# VPU "slab" path: tiny channel counts, HW % 128 == 0
# ---------------------------------------------------------------------------
def _make_slab_kernel(c_in, c_out, b_n, s_chunk, n_full, rem):
    def kernel(x_ref, w_ref, shift_ref, o_ref):
        # x_ref     : (b_n, c_in,  s_tile, 128)  VMEM, input dtype
        # w_ref     : (c_out, c_in)              SMEM, f32 (BN scale folded in)
        # shift_ref : (c_out,)                   SMEM, f32 (bias*scale + shift)
        # o_ref     : (b_n, c_out, s_tile, 128)  VMEM
        w_s = [[w_ref[c, k] for k in range(c_in)] for c in range(c_out)]
        b_s = [shift_ref[c] for c in range(c_out)]

        def compute(bi, r0, rows):
            # Load the c_in input slabs once, produce all c_out output slabs.
            xs = [x_ref[bi, k, pl.ds(r0, rows), :].astype(jnp.float32)
                  for k in range(c_in)]
            for c in range(c_out):
                acc = xs[0] * w_s[c][0]
                for k in range(1, c_in):            # static unroll over C_in
                    acc = acc + xs[k] * w_s[c][k]
                acc = jnp.maximum(acc + b_s[c], 0.0)
                o_ref[bi, c, pl.ds(r0, rows), :] = acc.astype(o_ref.dtype)

        def per_image(bi):
            if n_full == 1:
                compute(bi, 0, s_chunk)
            else:
                # Chunked so accumulator + inputs stay inside the vreg file;
                # each chunk carries plenty of independent vector work, so a
                # non-unrolled loop is fine for this HBM-bound kernel.
                def chunk_body(ci, carry):
                    compute(bi, pl.multiple_of(ci * s_chunk, s_chunk), s_chunk)
                    return carry
                jax.lax.fori_loop(0, n_full, chunk_body, 0)
            if rem:
                compute(bi, n_full * s_chunk, rem)

        if b_n == 1:
            per_image(0)
        else:
            def batch_body(bi, carry):
                per_image(bi)
                return carry
            jax.lax.fori_loop(0, b_n, batch_body, 0)

    return kernel


def _gating_slab(x_nchw, w_folded, shift, budget, limit_cap):
    N, C_in, H, W = x_nchw.shape
    C_out = w_folded.shape[0]
    HW = H * W
    S_total = HW // 128
    dtype = x_nchw.dtype
    itemsize = jnp.dtype(dtype).itemsize
    pack = _sublane_pack(dtype)

    # --- tile selection: fill VMEM, amortize the ~0.35us/step grid overhead ---
    row_bytes = 2 * (C_in + C_out) * 128 * itemsize   # dbl-buffered in+out per row
    max_rows = max(8, budget // row_bytes)

    if S_total > max_rows:
        s_tile = max(32, (max_rows // 32) * 32)       # tile the spatial axis
        b_n = 1
    else:
        s_tile = S_total                              # whole image per step
        b_n = max(1, min(N, max_rows // max(S_total, 1)))   # fold several images

    # Keep >= 2 grid programs so both v7x TensorCores get work.
    if _cdiv(N, b_n) * _cdiv(S_total, s_tile) < 2:
        if N >= 2:
            b_n = _cdiv(N, 2)
        elif S_total >= 16:
            s_tile = _round_up(_cdiv(S_total, 2), 8)

    # In-kernel compute chunk (rows): keep C_in slabs + one accumulator in vregs.
    s_chunk = min(max(8, min(32, (256 // (C_in + 2)) // 8 * 8)), s_tile)
    n_full = s_tile // s_chunk
    rem = s_tile - n_full * s_chunk

    # Padding-aware VMEM accounting (last-two dims are dense; only sub-8 tiles pad).
    pad_rows = _round_up(s_tile, pack)
    blk_bytes = 2 * b_n * (C_in + C_out) * pad_rows * 128 * itemsize
    vmem_limit = int(min(limit_cap, max(blk_bytes + (16 << 20), 32 << 20)))

    # NCHW -> (N, C_in, HW//128, 128): free reshape, spatial fills sublanes+lanes.
    x4 = x_nchw.reshape(N, C_in, S_total, 128)

    grid = (_cdiv(N, b_n), _cdiv(S_total, s_tile))
    kernel = _make_slab_kernel(C_in, C_out, b_n, s_chunk, n_full, rem)

    cost = pl.CostEstimate(
        flops=2 * N * HW * C_in * C_out,
        transcendentals=0,
        bytes_accessed=N * HW * (C_in + C_out) * itemsize + C_out * (C_in + 1) * 4)

    out4 = pl.pallas_call(
        kernel,
        out_shape=jax.ShapeDtypeStruct((N, C_out, S_total, 128), dtype),
        grid=grid,
        in_specs=[
            pl.BlockSpec((b_n, C_in, s_tile, 128), lambda i, j: (i, 0, j, 0)),
            pl.BlockSpec(memory_space=pltpu.MemorySpace.SMEM),   # weights (C_out, C_in)
            pl.BlockSpec(memory_space=pltpu.MemorySpace.SMEM),   # shift   (C_out,)
        ],
        out_specs=pl.BlockSpec((b_n, C_out, s_tile, 128), lambda i, j: (i, 0, j, 0)),
        compiler_params=pltpu.CompilerParams(
            dimension_semantics=("parallel", "parallel"),
            vmem_limit_bytes=vmem_limit),
        cost_estimate=cost,
    )(x4, w_folded.astype(jnp.float32), shift.astype(jnp.float32))

    return out4.reshape(N, C_out, H, W)


# ---------------------------------------------------------------------------
# MXU path: larger channel counts, or HW not a multiple of 128
# ---------------------------------------------------------------------------
def _gating_mxu(x_nchw, w_folded, shift, budget, limit_cap):
    N, C_in, H, W = x_nchw.shape
    C_out = w_folded.shape[0]
    HW = H * W
    dtype = x_nchw.dtype
    itemsize = jnp.dtype(dtype).itemsize
    pack = _sublane_pack(dtype)

    c_in_pad = _round_up(C_in, pack)
    c_out_pad = _round_up(C_out, pack)
    # dbl-buffered in+out blocks + the f32 matmul result, per output column
    col_bytes = 2 * (c_in_pad + c_out_pad) * itemsize + c_out_pad * 4
    max_t = max(128, budget // col_bytes)
    t_hw = min(HW, (max_t // 128) * 128)
    if N == 1 and t_hw >= HW and HW > 256:
        # keep >= 2 programs so both v7x TensorCores are used
        t_hw = min(HW, max(128, _round_up(_cdiv(HW, 2), 128)))
    if t_hw >= HW:
        t_hw = HW
    grid = (N, _cdiv(HW, t_hw))

    blk_bytes = col_bytes * t_hw
    vmem_limit = int(min(limit_cap, max(blk_bytes + (16 << 20), 32 << 20)))

    # Feed the MXU native low-precision operands; accumulate in f32.
    if jnp.dtype(dtype) in (jnp.dtype(jnp.bfloat16), jnp.dtype(jnp.float16)):
        w_mat = w_folded.astype(dtype)
    else:
        w_mat = w_folded.astype(jnp.float32)
    shift2 = shift.reshape(C_out, 1).astype(jnp.float32)

    x3 = x_nchw.reshape(N, C_in, HW)   # free reshape, spatial lane-dense

    def kernel(x_ref, w_ref, shift_ref, o_ref):
        y = jax.lax.dot_general(
            w_ref[...], x_ref[0],
            dimension_numbers=(((1,), (0,)), ((), ())),
            preferred_element_type=jnp.float32)
        y = y + shift_ref[...]
        o_ref[0] = jnp.maximum(y, 0.0).astype(o_ref.dtype)

    cost = pl.CostEstimate(
        flops=2 * N * HW * C_in * C_out,
        transcendentals=0,
        bytes_accessed=N * HW * (C_in + C_out) * itemsize + C_out * (C_in + 1) * 4)

    out3 = pl.pallas_call(
        kernel,
        out_shape=jax.ShapeDtypeStruct((N, C_out, HW), dtype),
        grid=grid,
        in_specs=[
            pl.BlockSpec((1, C_in, t_hw), lambda n, j: (n, 0, j)),
            pl.BlockSpec((C_out, C_in), lambda n, j: (0, 0)),   # resident
            pl.BlockSpec((C_out, 1), lambda n, j: (0, 0)),      # resident
        ],
        out_specs=pl.BlockSpec((1, C_out, t_hw), lambda n, j: (n, 0, j)),
        compiler_params=pltpu.CompilerParams(
            dimension_semantics=("parallel", "parallel"),
            vmem_limit_bytes=vmem_limit),
        cost_estimate=cost,
    )(x3, w_mat, shift2)

    return out3.reshape(N, C_out, H, W)


# ---------------------------------------------------------------------------
# Public wrapper
# ---------------------------------------------------------------------------
def unet_grid_gating_signal2(x_nchw, weight, bias, bn_gamma, bn_beta,
                             bn_mean, bn_var, eps=1e-5, is_batchnorm=True):
    """Conv2d(1x1, stride 1, pad 0) -> BatchNorm2d (eval) -> ReLU.

    x_nchw : (N, C_in, H, W)
    weight : PyTorch layout (C_out, C_in) or (C_out, C_in, 1, 1)
    bias, bn_* : (C_out,)
    Returns (N, C_out, H, W) in x's dtype.
    """
    N, C_in, H, W = x_nchw.shape
    C_out = weight.shape[0]
    w2 = weight.reshape(C_out, -1).astype(jnp.float32)           # (C_out, C_in)

    # Fold eval-mode BatchNorm + conv bias:
    #   relu(s*(conv(x)+b - mean) * g + beta)  ==  relu(x @ (W*scale) + shift)
    if is_batchnorm:
        inv_std = 1.0 / jnp.sqrt(bn_var.astype(jnp.float32) + eps)
        bn_scale = bn_gamma.astype(jnp.float32) * inv_std
        bn_shift = bn_beta.astype(jnp.float32) - bn_mean.astype(jnp.float32) * bn_scale
    else:
        bn_scale = jnp.ones((C_out,), jnp.float32)
        bn_shift = jnp.zeros((C_out,), jnp.float32)
    w_folded = w2 * bn_scale[:, None]                             # (C_out, C_in)
    shift = bias.astype(jnp.float32) * bn_scale + bn_shift        # (C_out,)

    budget, limit_cap = _vmem_budget()
    HW = H * W
    if (HW % 128 == 0 and C_in <= _VPU_MAX_CIN and C_out <= _VPU_MAX_COUT
            and C_in * C_out <= _VPU_MAX_PROD):
        return _gating_slab(x_nchw, w_folded, shift, budget, limit_cap)
    return _gating_mxu(x_nchw, w_folded, shift, budget, limit_cap)


def _init_params(key, in_size, out_size):
    """Deterministic kaiming-normal init for a 1x1 conv (init_weights(kaiming))."""
    kw, _ = jax.random.split(key)
    fan_in = in_size * 1 * 1
    std = math.sqrt(2.0 / fan_in)
    # PyTorch conv weight layout: (C_out, C_in) (the 1x1 spatial dims squeezed).
    w = jax.random.normal(kw, (out_size, in_size), dtype=jnp.float32) * std
    bias = jnp.zeros((out_size,), jnp.float32)
    # BatchNorm2d defaults: gamma=1, beta=0, running_mean=0, running_var=1.
    gamma = jnp.ones((out_size,), jnp.float32)
    beta = jnp.zeros((out_size,), jnp.float32)
    mean = jnp.zeros((out_size,), jnp.float32)
    var = jnp.ones((out_size,), jnp.float32)
    return w, bias, gamma, beta, mean, var


if __name__ == "__main__":
    key = jax.random.PRNGKey(0)
    kx, kp = jax.random.split(key)

    N, C_in, H, W = 2, 4, 16, 16
    C_out = 8

    x = jax.random.normal(kx, (N, C_in, H, W), dtype=jnp.float32)
    w, b, gamma, beta, mean, var = _init_params(kp, C_in, C_out)

    out = unet_grid_gating_signal2(x, w, b, gamma, beta, mean, var)
    out = jax.block_until_ready(out)

    # Pure-JAX reference (eval-mode Conv1x1 -> BN -> ReLU), PyTorch weight layout.
    ref = jnp.einsum("nchw,oc->nohw", x, w) + b.reshape(1, C_out, 1, 1)
    inv_std = 1.0 / jnp.sqrt(var + 1e-5)
    ref = (ref - mean.reshape(1, C_out, 1, 1)) * (gamma * inv_std).reshape(1, C_out, 1, 1) \
          + beta.reshape(1, C_out, 1, 1)
    ref = jnp.maximum(ref, 0.0)

    assert out.shape == (N, C_out, H, W)
    assert jnp.allclose(out, ref, atol=1e-5, rtol=1e-5)

    # TODO(synk): training-mode BatchNorm (batch-stat computation + running-stat
    # update) is not implemented; the kernel folds eval-mode BN stats.

    print("KERNEL_OK")
</pallas_src>

<mosaic_0001>
module attributes {stable_mosaic.version = 11 : i64} {
  func.func @kernel(%arg0: i32, %arg1: i32, %arg2: memref<1x4x2x128xf32, #tpu.memory_space<vmem>>, %arg3: memref<8x4xf32, #tpu.memory_space<smem>>, %arg4: memref<8xf32, #tpu.memory_space<smem>>, %arg5: memref<1x8x2x128xf32, #tpu.memory_space<vmem>>) attributes {dimension_semantics = [#tpu.dimension_semantics<parallel>, #tpu.dimension_semantics<parallel>], iteration_bounds = array<i64: 2, 1>, scalar_prefetch = 0 : i64, scratch_operands = 0 : i64, tpu.core_type = #tpu.core_type<tc>, window_params = [{transform_indices = @transform_0, window_bounds = array<i64: 1, 4, 2, 128>}, {transform_indices = @transform_1, window_bounds = array<i64: 8, 4>}, {transform_indices = @transform_2, window_bounds = array<i64: 8>}, {transform_indices = @transform_3, window_bounds = array<i64: 1, 8, 2, 128>}]} {
    %c0 = arith.constant 0 : index
    %c0_0 = arith.constant 0 : index
    %0 = memref.load %arg3[%c0, %c0_0] : memref<8x4xf32, #tpu.memory_space<smem>>
    %c0_1 = arith.constant 0 : index
    %c1 = arith.constant 1 : index
    %1 = memref.load %arg3[%c0_1, %c1] : memref<8x4xf32, #tpu.memory_space<smem>>
    %c0_2 = arith.constant 0 : index
    %c2 = arith.constant 2 : index
    %2 = memref.load %arg3[%c0_2, %c2] : memref<8x4xf32, #tpu.memory_space<smem>>
    %c0_3 = arith.constant 0 : index
    %c3 = arith.constant 3 : index
    %3 = memref.load %arg3[%c0_3, %c3] : memref<8x4xf32, #tpu.memory_space<smem>>
    %c1_4 = arith.constant 1 : index
    %c0_5 = arith.constant 0 : index
    %4 = memref.load %arg3[%c1_4, %c0_5] : memref<8x4xf32, #tpu.memory_space<smem>>
    %c1_6 = arith.constant 1 : index
    %c1_7 = arith.constant 1 : index
    %5 = memref.load %arg3[%c1_6, %c1_7] : memref<8x4xf32, #tpu.memory_space<smem>>
    %c1_8 = arith.constant 1 : index
    %c2_9 = arith.constant 2 : index
    %6 = memref.load %arg3[%c1_8, %c2_9] : memref<8x4xf32, #tpu.memory_space<smem>>
    %c1_10 = arith.constant 1 : index
    %c3_11 = arith.constant 3 : index
    %7 = memref.load %arg3[%c1_10, %c3_11] : memref<8x4xf32, #tpu.memory_space<smem>>
    %c2_12 = arith.constant 2 : index
    %c0_13 = arith.constant 0 : index
    %8 = memref.load %arg3[%c2_12, %c0_13] : memref<8x4xf32, #tpu.memory_space<smem>>
    %c2_14 = arith.constant 2 : index
    %c1_15 = arith.constant 1 : index
    %9 = memref.load %arg3[%c2_14, %c1_15] : memref<8x4xf32, #tpu.memory_space<smem>>
    %c2_16 = arith.constant 2 : index
    %c2_17 = arith.constant 2 : index
    %10 = memref.load %arg3[%c2_16, %c2_17] : memref<8x4xf32, #tpu.memory_space<smem>>
    %c2_18 = arith.constant 2 : index
    %c3_19 = arith.constant 3 : index
    %11 = memref.load %arg3[%c2_18, %c3_19] : memref<8x4xf32, #tpu.memory_space<smem>>
    %c3_20 = arith.constant 3 : index
    %c0_21 = arith.constant 0 : index
    %12 = memref.load %arg3[%c3_20, %c0_21] : memref<8x4xf32, #tpu.memory_space<smem>>
    %c3_22 = arith.constant 3 : index
    %c1_23 = arith.constant 1 : index
    %13 = memref.load %arg3[%c3_22, %c1_23] : memref<8x4xf32, #tpu.memory_space<smem>>
    %c3_24 = arith.constant 3 : index
    %c2_25 = arith.constant 2 : index
    %14 = memref.load %arg3[%c3_24, %c2_25] : memref<8x4xf32, #tpu.memory_space<smem>>
    %c3_26 = arith.constant 3 : index
    %c3_27 = arith.constant 3 : index
    %15 = memref.load %arg3[%c3_26, %c3_27] : memref<8x4xf32, #tpu.memory_space<smem>>
    %c4 = arith.constant 4 : index
    %c0_28 = arith.constant 0 : index
    %16 = memref.load %arg3[%c4, %c0_28] : memref<8x4xf32, #tpu.memory_space<smem>>
    %c4_29 = arith.constant 4 : index
    %c1_30 = arith.constant 1 : index
    %17 = memref.load %arg3[%c4_29, %c1_30] : memref<8x4xf32, #tpu.memory_space<smem>>
    %c4_31 = arith.constant 4 : index
    %c2_32 = arith.constant 2 : index
    %18 = memref.load %arg3[%c4_31, %c2_32] : memref<8x4xf32, #tpu.memory_space<smem>>
    %c4_33 = arith.constant 4 : index
    %c3_34 = arith.constant 3 : index
    %19 = memref.load %arg3[%c4_33, %c3_34] : memref<8x4xf32, #tpu.memory_space<smem>>
    %c5 = arith.constant 5 : index
    %c0_35 = arith.constant 0 : index
    %20 = memref.load %arg3[%c5, %c0_35] : memref<8x4xf32, #tpu.memory_space<smem>>
    %c5_36 = arith.constant 5 : index
    %c1_37 = arith.constant 1 : index
    %21 = memref.load %arg3[%c5_36, %c1_37] : memref<8x4xf32, #tpu.memory_space<smem>>
    %c5_38 = arith.constant 5 : index
    %c2_39 = arith.constant 2 : index
    %22 = memref.load %arg3[%c5_38, %c2_39] : memref<8x4xf32, #tpu.memory_space<smem>>
    %c5_40 = arith.constant 5 : index
    %c3_41 = arith.constant 3 : index
    %23 = memref.load %arg3[%c5_40, %c3_41] : memref<8x4xf32, #tpu.memory_space<smem>>
    %c6 = arith.constant 6 : index
    %c0_42 = arith.constant 0 : index
    %24 = memref.load %arg3[%c6, %c0_42] : memref<8x4xf32, #tpu.memory_space<smem>>
    %c6_43 = arith.constant 6 : index
    %c1_44 = arith.constant 1 : index
    %25 = memref.load %arg3[%c6_43, %c1_44] : memref<8x4xf32, #tpu.memory_space<smem>>
    %c6_45 = arith.constant 6 : index
    %c2_46 = arith.constant 2 : index
    %26 = memref.load %arg3[%c6_45, %c2_46] : memref<8x4xf32, #tpu.memory_space<smem>>
    %c6_47 = arith.constant 6 : index
    %c3_48 = arith.constant 3 : index
    %27 = memref.load %arg3[%c6_47, %c3_48] : memref<8x4xf32, #tpu.memory_space<smem>>
    %c7 = arith.constant 7 : index
    %c0_49 = arith.constant 0 : index
    %28 = memref.load %arg3[%c7, %c0_49] : memref<8x4xf32, #tpu.memory_space<smem>>
    %c7_50 = arith.constant 7 : index
    %c1_51 = arith.constant 1 : index
    %29 = memref.load %arg3[%c7_50, %c1_51] : memref<8x4xf32, #tpu.memory_space<smem>>
    %c7_52 = arith.constant 7 : index
    %c2_53 = arith.constant 2 : index
    %30 = memref.load %arg3[%c7_52, %c2_53] : memref<8x4xf32, #tpu.memory_space<smem>>
    %c7_54 = arith.constant 7 : index
    %c3_55 = arith.constant 3 : index
    %31 = memref.load %arg3[%c7_54, %c3_55] : memref<8x4xf32, #tpu.memory_space<smem>>
    %c0_56 = arith.constant 0 : index
    %32 = memref.load %arg4[%c0_56] : memref<8xf32, #tpu.memory_space<smem>>
    %c1_57 = arith.constant 1 : index
    %33 = memref.load %arg4[%c1_57] : memref<8xf32, #tpu.memory_space<smem>>
    %c2_58 = arith.constant 2 : index
    %34 = memref.load %arg4[%c2_58] : memref<8xf32, #tpu.memory_space<smem>>
    %c3_59 = arith.constant 3 : index
    %35 = memref.load %arg4[%c3_59] : memref<8xf32, #tpu.memory_space<smem>>
    %c4_60 = arith.constant 4 : index
    %36 = memref.load %arg4[%c4_60] : memref<8xf32, #tpu.memory_space<smem>>
    %c5_61 = arith.constant 5 : index
    %37 = memref.load %arg4[%c5_61] : memref<8xf32, #tpu.memory_space<smem>>
    %c6_62 = arith.constant 6 : index
    %38 = memref.load %arg4[%c6_62] : memref<8xf32, #tpu.memory_space<smem>>
    %c7_63 = arith.constant 7 : index
    %39 = memref.load %arg4[%c7_63] : memref<8xf32, #tpu.memory_space<smem>>
    %c0_64 = arith.constant 0 : index
    %c0_65 = arith.constant 0 : index
    %c0_66 = arith.constant 0 : index
    %c0_67 = arith.constant 0 : index
    %40 = vector.load %arg2[%c0_64, %c0_65, %c0_66, %c0_67] : memref<1x4x2x128xf32, #tpu.memory_space<vmem>>, vector<1x1x2x128xf32>
    %41 = vector.shape_cast %40 : vector<1x1x2x128xf32> to vector<2x128xf32>
    %c0_68 = arith.constant 0 : index
    %c1_69 = arith.constant 1 : index
    %c0_70 = arith.constant 0 : index
    %c0_71 = arith.constant 0 : index
    %42 = vector.load %arg2[%c0_68, %c1_69, %c0_70, %c0_71] : memref<1x4x2x128xf32, #tpu.memory_space<vmem>>, vector<1x1x2x128xf32>
    %43 = vector.shape_cast %42 : vector<1x1x2x128xf32> to vector<2x128xf32>
    %c0_72 = arith.constant 0 : index
    %c2_73 = arith.constant 2 : index
    %c0_74 = arith.constant 0 : index
    %c0_75 = arith.constant 0 : index
    %44 = vector.load %arg2[%c0_72, %c2_73, %c0_74, %c0_75] : memref<1x4x2x128xf32, #tpu.memory_space<vmem>>, vector<1x1x2x128xf32>
    %45 = vector.shape_cast %44 : vector<1x1x2x128xf32> to vector<2x128xf32>
    %c0_76 = arith.constant 0 : index
    %c3_77 = arith.constant 3 : index
    %c0_78 = arith.constant 0 : index
    %c0_79 = arith.constant 0 : index
    %46 = vector.load %arg2[%c0_76, %c3_77, %c0_78, %c0_79] : memref<1x4x2x128xf32, #tpu.memory_space<vmem>>, vector<1x1x2x128xf32>
    %47 = vector.shape_cast %46 : vector<1x1x2x128xf32> to vector<2x128xf32>
    %48 = vector.broadcast %0 : f32 to vector<2x128xf32>
    %49 = arith.mulf %41, %48 : vector<2x128xf32>
    %50 = vector.broadcast %1 : f32 to vector<2x128xf32>
    %51 = arith.mulf %43, %50 : vector<2x128xf32>
    %52 = arith.addf %49, %51 : vector<2x128xf32>
    %53 = vector.broadcast %2 : f32 to vector<2x128xf32>
    %54 = arith.mulf %45, %53 : vector<2x128xf32>
    %55 = arith.addf %52, %54 : vector<2x128xf32>
    %56 = vector.broadcast %3 : f32 to vector<2x128xf32>
    %57 = arith.mulf %47, %56 : vector<2x128xf32>
    %58 = arith.addf %55, %57 : vector<2x128xf32>
    %59 = vector.broadcast %32 : f32 to vector<2x128xf32>
    %60 = arith.addf %58, %59 : vector<2x128xf32>
    %cst = arith.constant 0.000000e+00 : f32
    %61 = vector.broadcast %cst : f32 to vector<2x128xf32>
    %62 = arith.maximumf %60, %61 : vector<2x128xf32>
    %c0_80 = arith.constant 0 : index
    %c0_81 = arith.constant 0 : index
    %c0_82 = arith.constant 0 : index
    %c0_83 = arith.constant 0 : index
    %63 = vector.load %arg5[%c0_80, %c0_81, %c0_82, %c0_83] : memref<1x8x2x128xf32, #tpu.memory_space<vmem>>, vector<1x1x2x128xf32>
    %64 = vector.shape_cast %63 : vector<1x1x2x128xf32> to vector<2x128xf32>
    %65 = vector.shape_cast %62 : vector<2x128xf32> to vector<1x1x2x128xf32>
    tpu.vector_store %arg5[%c0_80, %c0_81, %c0_82, %c0_83], %65 {strides = array<i32>} : memref<1x8x2x128xf32, #tpu.memory_space<vmem>>, vector<1x1x2x128xf32>,
    %66 = vector.broadcast %4 : f32 to vector<2x128xf32>
    %67 = arith.mulf %41, %66 : vector<2x128xf32>
    %68 = vector.broadcast %5 : f32 to vector<2x128xf32>
    %69 = arith.mulf %43, %68 : vector<2x128xf32>
    %70 = arith.addf %67, %69 : vector<2x128xf32>
    %71 = vector.broadcast %6 : f32 to vector<2x128xf32>
    %72 = arith.mulf %45, %71 : vector<2x128xf32>
    %73 = arith.addf %70, %72 : vector<2x128xf32>
    %74 = vector.broadcast %7 : f32 to vector<2x128xf32>
    %75 = arith.mulf %47, %74 : vector<2x128xf32>
    %76 = arith.addf %73, %75 : vector<2x128xf32>
    %77 = vector.broadcast %33 : f32 to vector<2x128xf32>
    %78 = arith.addf %76, %77 : vector<2x128xf32>
    %cst_84 = arith.constant 0.000000e+00 : f32
    %79 = vector.broadcast %cst_84 : f32 to vector<2x128xf32>
    %80 = arith.maximumf %78, %79 : vector<2x128xf32>
    %c0_85 = arith.constant 0 : index
    %c1_86 = arith.constant 1 : index
    %c0_87 = arith.constant 0 : index
    %c0_88 = arith.constant 0 : index
    %81 = vector.load %arg5[%c0_85, %c1_86, %c0_87, %c0_88] : memref<1x8x2x128xf32, #tpu.memory_space<vmem>>, vector<1x1x2x128xf32>
    %82 = vector.shape_cast %81 : vector<1x1x2x128xf32> to vector<2x128xf32>
    %83 = vector.shape_cast %80 : vector<2x128xf32> to vector<1x1x2x128xf32>
    tpu.vector_store %arg5[%c0_85, %c1_86, %c0_87, %c0_88], %83 {strides = array<i32>} : memref<1x8x2x128xf32, #tpu.memory_space<vmem>>, vector<1x1x2x128xf32>,
    %84 = vector.broadcast %8 : f32 to vector<2x128xf32>
    %85 = arith.mulf %41, %84 : vector<2x128xf32>
    %86 = vector.broadcast %9 : f32 to vector<2x128xf32>
    %87 = arith.mulf %43, %86 : vector<2x128xf32>
    %88 = arith.addf %85, %87 : vector<2x128xf32>
    %89 = vector.broadcast %10 : f32 to vector<2x128xf32>
    %90 = arith.mulf %45, %89 : vector<2x128xf32>
    %91 = arith.addf %88, %90 : vector<2x128xf32>
    %92 = vector.broadcast %11 : f32 to vector<2x128xf32>
    %93 = arith.mulf %47, %92 : vector<2x128xf32>
    %94 = arith.addf %91, %93 : vector<2x128xf32>
    %95 = vector.broadcast %34 : f32 to vector<2x128xf32>
    %96 = arith.addf %94, %95 : vector<2x128xf32>
    %cst_89 = arith.constant 0.000000e+00 : f32
    %97 = vector.broadcast %cst_89 : f32 to vector<2x128xf32>
    %98 = arith.maximumf %96, %97 : vector<2x128xf32>
    %c0_90 = arith.constant 0 : index
    %c2_91 = arith.constant 2 : index
    %c0_92 = arith.constant 0 : index
    %c0_93 = arith.constant 0 : index
    %99 = vector.load %arg5[%c0_90, %c2_91, %c0_92, %c0_93] : memref<1x8x2x128xf32, #tpu.memory_space<vmem>>, vector<1x1x2x128xf32>
    %100 = vector.shape_cast %99 : vector<1x1x2x128xf32> to vector<2x128xf32>
    %101 = vector.shape_cast %98 : vector<2x128xf32> to vector<1x1x2x128xf32>
    tpu.vector_store %arg5[%c0_90, %c2_91, %c0_92, %c0_93], %101 {strides = array<i32>} : memref<1x8x2x128xf32, #tpu.memory_space<vmem>>, vector<1x1x2x128xf32>,
    %102 = vector.broadcast %12 : f32 to vector<2x128xf32>
    %103 = arith.mulf %41, %102 : vector<2x128xf32>
    %104 = vector.broadcast %13 : f32 to vector<2x128xf32>
    %105 = arith.mulf %43, %104 : vector<2x128xf32>
    %106 = arith.addf %103, %105 : vector<2x128xf32>
    %107 = vector.broadcast %14 : f32 to vector<2x128xf32>
    %108 = arith.mulf %45, %107 : vector<2x128xf32>
    %109 = arith.addf %106, %108 : vector<2x128xf32>
    %110 = vector.broadcast %15 : f32 to vector<2x128xf32>
    %111 = arith.mulf %47, %110 : vector<2x128xf32>
    %112 = arith.addf %109, %111 : vector<2x128xf32>
    %113 = vector.broadcast %35 : f32 to vector<2x128xf32>
    %114 = arith.addf %112, %113 : vector<2x128xf32>
    %cst_94 = arith.constant 0.000000e+00 : f32
    %115 = vector.broadcast %cst_94 : f32 to vector<2x128xf32>
    %116 = arith.maximumf %114, %115 : vector<2x128xf32>
    %c0_95 = arith.constant 0 : index
    %c3_96 = arith.constant 3 : index
    %c0_97 = arith.constant 0 : index
    %c0_98 = arith.constant 0 : index
    %117 = vector.load %arg5[%c0_95, %c3_96, %c0_97, %c0_98] : memref<1x8x2x128xf32, #tpu.memory_space<vmem>>, vector<1x1x2x128xf32>
    %118 = vector.shape_cast %117 : vector<1x1x2x128xf32> to vector<2x128xf32>
    %119 = vector.shape_cast %116 : vector<2x128xf32> to vector<1x1x2x128xf32>
    tpu.vector_store %arg5[%c0_95, %c3_96, %c0_97, %c0_98], %119 {strides = array<i32>} : memref<1x8x2x128xf32, #tpu.memory_space<vmem>>, vector<1x1x2x128xf32>,
    %120 = vector.broadcast %16 : f32 to vector<2x128xf32>
    %121 = arith.mulf %41, %120 : vector<2x128xf32>
    %122 = vector.broadcast %17 : f32 to vector<2x128xf32>
    %123 = arith.mulf %43, %122 : vector<2x128xf32>
    %124 = arith.addf %121, %123 : vector<2x128xf32>
    %125 = vector.broadcast %18 : f32 to vector<2x128xf32>
    %126 = arith.mulf %45, %125 : vector<2x128xf32>
    %127 = arith.addf %124, %126 : vector<2x128xf32>
    %128 = vector.broadcast %19 : f32 to vector<2x128xf32>
    %129 = arith.mulf %47, %128 : vector<2x128xf32>
    %130 = arith.addf %127, %129 : vector<2x128xf32>
    %131 = vector.broadcast %36 : f32 to vector<2x128xf32>
    %132 = arith.addf %130, %131 : vector<2x128xf32>
    %cst_99 = arith.constant 0.000000e+00 : f32
    %133 = vector.broadcast %cst_99 : f32 to vector<2x128xf32>
    %134 = arith.maximumf %132, %133 : vector<2x128xf32>
    %c0_100 = arith.constant 0 : index
    %c4_101 = arith.constant 4 : index
    %c0_102 = arith.constant 0 : index
    %c0_103 = arith.constant 0 : index
    %135 = vector.load %arg5[%c0_100, %c4_101, %c0_102, %c0_103] : memref<1x8x2x128xf32, #tpu.memory_space<vmem>>, vector<1x1x2x128xf32>
    %136 = vector.shape_cast %135 : vector<1x1x2x128xf32> to vector<2x128xf32>
    %137 = vector.shape_cast %134 : vector<2x128xf32> to vector<1x1x2x128xf32>
    tpu.vector_store %arg5[%c0_100, %c4_101, %c0_102, %c0_103], %137 {strides = array<i32>} : memref<1x8x2x128xf32, #tpu.memory_space<vmem>>, vector<1x1x2x128xf32>,
    %138 = vector.broadcast %20 : f32 to vector<2x128xf32>
    %139 = arith.mulf %41, %138 : vector<2x128xf32>
    %140 = vector.broadcast %21 : f32 to vector<2x128xf32>
    %141 = arith.mulf %43, %140 : vector<2x128xf32>
    %142 = arith.addf %139, %141 : vector<2x128xf32>
    %143 = vector.broadcast %22 : f32 to vector<2x128xf32>
    %144 = arith.mulf %45, %143 : vector<2x128xf32>
    %145 = arith.addf %142, %144 : vector<2x128xf32>
    %146 = vector.broadcast %23 : f32 to vector<2x128xf32>
    %147 = arith.mulf %47, %146 : vector<2x128xf32>
    %148 = arith.addf %145, %147 : vector<2x128xf32>
    %149 = vector.broadcast %37 : f32 to vector<2x128xf32>
    %150 = arith.addf %148, %149 : vector<2x128xf32>
    %cst_104 = arith.constant 0.000000e+00 : f32
    %151 = vector.broadcast %cst_104 : f32 to vector<2x128xf32>
    %152 = arith.maximumf %150, %151 : vector<2x128xf32>
    %c0_105 = arith.constant 0 : index
    %c5_106 = arith.constant 5 : index
    %c0_107 = arith.constant 0 : index
    %c0_108 = arith.constant 0 : index
    %153 = vector.load %arg5[%c0_105, %c5_106, %c0_107, %c0_108] : memref<1x8x2x128xf32, #tpu.memory_space<vmem>>, vector<1x1x2x128xf32>
    %154 = vector.shape_cast %153 : vector<1x1x2x128xf32> to vector<2x128xf32>
    %155 = vector.shape_cast %152 : vector<2x128xf32> to vector<1x1x2x128xf32>
    tpu.vector_store %arg5[%c0_105, %c5_106, %c0_107, %c0_108], %155 {strides = array<i32>} : memref<1x8x2x128xf32, #tpu.memory_space<vmem>>, vector<1x1x2x128xf32>,
    %156 = vector.broadcast %24 : f32 to vector<2x128xf32>
    %157 = arith.mulf %41, %156 : vector<2x128xf32>
    %158 = vector.broadcast %25 : f32 to vector<2x128xf32>
    %159 = arith.mulf %43, %158 : vector<2x128xf32>
    %160 = arith.addf %157, %159 : vector<2x128xf32>
    %161 = vector.broadcast %26 : f32 to vector<2x128xf32>
    %162 = arith.mulf %45, %161 : vector<2x128xf32>
    %163 = arith.addf %160, %162 : vector<2x128xf32>
    %164 = vector.broadcast %27 : f32 to vector<2x128xf32>
    %165 = arith.mulf %47, %164 : vector<2x128xf32>
    %166 = arith.addf %163, %165 : vector<2x128xf32>
    %167 = vector.broadcast %38 : f32 to vector<2x128xf32>
    %168 = arith.addf %166, %167 : vector<2x128xf32>
    %cst_109 = arith.constant 0.000000e+00 : f32
    %169 = vector.broadcast %cst_109 : f32 to vector<2x128xf32>
    %170 = arith.maximumf %168, %169 : vector<2x128xf32>
    %c0_110 = arith.constant 0 : index
    %c6_111 = arith.constant 6 : index
    %c0_112 = arith.constant 0 : index
    %c0_113 = arith.constant 0 : index
    %171 = vector.load %arg5[%c0_110, %c6_111, %c0_112, %c0_113] : memref<1x8x2x128xf32, #tpu.memory_space<vmem>>, vector<1x1x2x128xf32>
    %172 = vector.shape_cast %171 : vector<1x1x2x128xf32> to vector<2x128xf32>
    %173 = vector.shape_cast %170 : vector<2x128xf32> to vector<1x1x2x128xf32>
    tpu.vector_store %arg5[%c0_110, %c6_111, %c0_112, %c0_113], %173 {strides = array<i32>} : memref<1x8x2x128xf32, #tpu.memory_space<vmem>>, vector<1x1x2x128xf32>,
    %174 = vector.broadcast %28 : f32 to vector<2x128xf32>
    %175 = arith.mulf %41, %174 : vector<2x128xf32>
    %176 = vector.broadcast %29 : f32 to vector<2x128xf32>
    %177 = arith.mulf %43, %176 : vector<2x128xf32>
    %178 = arith.addf %175, %177 : vector<2x128xf32>
    %179 = vector.broadcast %30 : f32 to vector<2x128xf32>
    %180 = arith.mulf %45, %179 : vector<2x128xf32>
    %181 = arith.addf %178, %180 : vector<2x128xf32>
    %182 = vector.broadcast %31 : f32 to vector<2x128xf32>
    %183 = arith.mulf %47, %182 : vector<2x128xf32>
    %184 = arith.addf %181, %183 : vector<2x128xf32>
    %185 = vector.broadcast %39 : f32 to vector<2x128xf32>
    %186 = arith.addf %184, %185 : vector<2x128xf32>
    %cst_114 = arith.constant 0.000000e+00 : f32
    %187 = vector.broadcast %cst_114 : f32 to vector<2x128xf32>
    %188 = arith.maximumf %186, %187 : vector<2x128xf32>
    %c0_115 = arith.constant 0 : index
    %c7_116 = arith.constant 7 : index
    %c0_117 = arith.constant 0 : index
    %c0_118 = arith.constant 0 : index
    %189 = vector.load %arg5[%c0_115, %c7_116, %c0_117, %c0_118] : memref<1x8x2x128xf32, #tpu.memory_space<vmem>>, vector<1x1x2x128xf32>
    %190 = vector.shape_cast %189 : vector<1x1x2x128xf32> to vector<2x128xf32>
    %191 = vector.shape_cast %188 : vector<2x128xf32> to vector<1x1x2x128xf32>
    tpu.vector_store %arg5[%c0_115, %c7_116, %c0_117, %c0_118], %191 {strides = array<i32>} : memref<1x8x2x128xf32, #tpu.memory_space<vmem>>, vector<1x1x2x128xf32>,
    return
  }
  func.func @transform_0(%arg0: i32, %arg1: i32) -> (i32, i32, i32, i32) {
    %c0_i32 = arith.constant 0 : i32
    %c0_i32_0 = arith.constant 0 : i32
    %c0_i32_1 = arith.constant 0 : i32
    return %arg0, %c0_i32, %arg1, %c0_i32_0 : i32, i32, i32, i32
  }
  func.func @transform_1(%arg0: i32, %arg1: i32) -> (i32, i32) {
    %c0_i32 = arith.constant 0 : i32
    %c0_i32_0 = arith.constant 0 : i32
    %c0_i32_1 = arith.constant 0 : i32
    return %c0_i32, %c0_i32_0 : i32, i32
  }
  func.func @transform_2(%arg0: i32, %arg1: i32) -> i32 {
    %c0_i32 = arith.constant 0 : i32
    %c0_i32_0 = arith.constant 0 : i32
    return %c0_i32 : i32
  }
  func.func @transform_3(%arg0: i32, %arg1: i32) -> (i32, i32, i32, i32) {
    %c0_i32 = arith.constant 0 : i32
    %c0_i32_0 = arith.constant 0 : i32
    %c0_i32_1 = arith.constant 0 : i32
    return %arg0, %c0_i32, %arg1, %c0_i32_0 : i32, i32, i32, i32
  }
}

</mosaic_0001>

<llo_original>
// kernel: tpu_custom_call.1
$region0: #{tpu_custom_call.1}
  #allocation0 [shape = 'u32[]', space=smem, size = 0x4, offset = 0x4, fixed_abs, tag = 'smem constant byte address 0x4 - core index']
  #allocation1 [shape = 'u32[144,128]{1,0:T(1,128)}', space=vmem, size = 0x12000, scoped, tag = 'internal scratch']
  %s0 = inlined_call_operand.hbm [shape: f32[2,4,2,128], index: 0, kind: input, shape index: {}]
  %s1 = inlined_call_operand.vmem [shape: f32[8,4], index: 1, kind: input, shape index: {}]
  %s2 = inlined_call_operand.vmem [shape: f32[8], index: 2, kind: input, shape index: {}]
  %s3 = inlined_call_operand.hbm [shape: f32[2,8,2,128], index: 3, kind: output, shape index: {}]
  %s4 = sld [smem:[#allocation0]]
  $region57: #{tpu_custom_call.1} parent=0
    _
  %s6 = ssub.s32 1, %s4
  %s7 = scalar_select 0, %s6, %s4
  $region1: #{tpu_custom_call.1} parent=0
    #allocation2 [shape = 'u8[8192]{0}', space=vmem, size = 0x2000, scoped, tag = 'input window, operand 0']
    #allocation3 [shape = 's32[2]{0}', space=sflag, size = 0x8, scoped, tag = 'scoped memory for tpu_custom_call.1']
    #allocation4 [shape = 's32[2]{0}', space=sflag, size = 0x8, scoped, tag = 'scoped memory for tpu_custom_call.1']
    #allocation5 [shape = 's32[2]{0}', space=sflag, size = 0x8, scoped, tag = 'scoped memory for tpu_custom_call.1']
    #allocation6 [shape = 'u8[4096]{0}', space=smem, size = 0x1000, scoped, tag = 'input window, operand 1, single buffered']
    #allocation7 [shape = 'u8[512]{0}', space=smem, size = 0x200, scoped, tag = 'input window, operand 2, single buffered']
    #allocation8 [shape = 's32[1]{0}', space=sflag, size = 0x4, scoped, tag = 'scoped memory for tpu_custom_call.1']
    #allocation9 [shape = 'u8[16384]{0}', space=vmem, size = 0x4000, scoped, tag = 'output window, operand 0']
    %8 = vsyncpa [#allocation3], 0
    %s9 = scalar_lea.sflag [#allocation3], 1
    %10 = vsyncpa %s9, 0
    %11 = vsyncpa [#allocation5], 0
    %12 = vsyncpa [#allocation8], 0
    %13 = vsyncpa [#allocation4], 0
    %s14 = scalar_lea.sflag [#allocation4], 1
    %15 = vsyncpa %s14, 0
    loop: start=0, step=1, limit=4
    $region2: #{tpu_custom_call.1} parent=1 // loop_pre_header
      _
    $region3: #{tpu_custom_call.1} parent=1 // loop_header
      %s17 = sphi 0, %s21
      %p18 = scmp.ge.s32.totalorder %s17, 4
      %s24 = sphi 0, %s36
      %s25 = sphi 0, %s32
      %s26 = sphi 0, %s24
      %s27 = sphi 0, %s25
      %s28 = sphi 0, %s26
      %s29 = sphi 0, %s27
      %s41 = sphi 0, %s43
      %s44 = sphi 0, %s41
      %s45 = sphi 0, %s44
      %s61 = sphi 0, %s45
      %s65 = sphi 0, %s65
      %s67 = sphi 0, %s65
      %s68 = sphi 0, %s67
      %s82 = sphi 0, %s68
      %s86 = sphi 0, %s86
      %s88 = sphi 0, %s86
      %s89 = sphi 0, %s88
      %s103 = sphi 0, %s89
      %s111 = sphi 0, %s113
      %s114 = sphi 0, %s111
      %s115 = sphi 0, %s114
      %s131 = sphi 0, %s115
    $region4: #{tpu_custom_call.1} parent=1 // loop_header_branch
      %20 = sbr.rel (%p18) target = $region8
    $region5: #{tpu_custom_call.1} parent=1 // loop_body
      %s22 = ssub.s32 %s17, 1
      %s23 = ssub.s32 %s17, 2
      %s30 = sadd.s32 1, %s25
      %p31 = scmp.ge.s32.totalorder %s30, 1
      %s32 = scalar_select %p31, 0, %s30
      %s33 = sadd.s32 1, %s24
      %s34 = scalar_select %p31, %s33, %s24
      %p35 = scmp.ge.s32.totalorder %s34, 2
      %s36 = scalar_select %p35, 0, %s34
      %s37 = ssub.s32 %s24, %s36
      %s38 = ssub.s32 %s25, %s32
      %s39 = sor.u32 %s37, %s38
      %p40 = scmp.eq.s32.totalorder %s39, 0
      %s42 = sadd.s32 %s41, 1
      %s43 = scalar_select %p40, %s41, %s42
      %p46 = pneg %p40
      %p47 = scmp.eq.s32.totalorder %s17, 1
      %p48 = por %p46, %p47
      %p49 = scmp.ne.s32.totalorder %s41, %s44
      %p50 = scmp.eq.s32.totalorder %s17, 0
      %p51 = por %p49, %p50
      %p52 = scmp.ne.s32.totalorder %s41, %s44
      %p53 = scmp.eq.s32.totalorder %s22, 1
      %p54 = por %p52, %p53
      %p55 = scmp.ne.s32.totalorder %s44, %s45
      %p56 = scmp.eq.s32.totalorder %s22, 0
      %p57 = por %p55, %p56
      %p58 = scmp.ne.s32.totalorder %s44, %s45
      %p59 = scmp.eq.s32.totalorder %s23, 1
      %p60 = por %p58, %p59
      %p62 = scmp.ne.s32.totalorder %s45, %s61
      %p63 = scmp.eq.s32.totalorder %s23, 0
      %p64 = por %p62, %p63
      %s66 = sadd.s32 %s65, 1
      %p69 = scmp.eq.s32.totalorder %s17, 1
      %p70 = scmp.ne.s32.totalorder %s65, %s67
      %p71 = scmp.eq.s32.totalorder %s17, 0
      %p72 = por %p70, %p71
      %p73 = scmp.ne.s32.totalorder %s65, %s67
      %p74 = scmp.eq.s32.totalorder %s22, 1
      %p75 = por %p73, %p74
      %p76 = scmp.ne.s32.totalorder %s67, %s68
      %p77 = scmp.eq.s32.totalorder %s22, 0
      %p78 = por %p76, %p77
      %p79 = scmp.ne.s32.totalorder %s67, %s68
      %p80 = scmp.eq.s32.totalorder %s23, 1
      %p81 = por %p79, %p80
      %p83 = scmp.ne.s32.totalorder %s68, %s82
      %p84 = scmp.eq.s32.totalorder %s23, 0
      %p85 = por %p83, %p84
      %s87 = sadd.s32 %s86, 1
      %p90 = scmp.eq.s32.totalorder %s17, 1
      %p91 = scmp.ne.s32.totalorder %s86, %s88
      %p92 = scmp.eq.s32.totalorder %s17, 0
      %p93 = por %p91, %p92
      %p94 = scmp.ne.s32.totalorder %s86, %s88
      %p95 = scmp.eq.s32.totalorder %s22, 1
      %p96 = por %p94, %p95
      %p97 = scmp.ne.s32.totalorder %s88, %s89
      %p98 = scmp.eq.s32.totalorder %s22, 0
      %p99 = por %p97, %p98
      %p100 = scmp.ne.s32.totalorder %s88, %s89
      %p101 = scmp.eq.s32.totalorder %s23, 1
      %p102 = por %p100, %p101
      %p104 = scmp.ne.s32.totalorder %s89, %s103
      %p105 = scmp.eq.s32.totalorder %s23, 0
      %p106 = por %p104, %p105
      %s107 = ssub.s32 %s24, %s36
      %s108 = ssub.s32 %s25, %s32
      %s109 = sor.u32 %s107, %s108
      %p110 = scmp.eq.s32.totalorder %s109, 0
      %s112 = sadd.s32 %s111, 1
      %s113 = scalar_select %p110, %s111, %s112
      %p116 = pneg %p110
      %p117 = scmp.eq.s32.totalorder %s17, 1
      %p118 = por %p116, %p117
      %p119 = scmp.ne.s32.totalorder %s111, %s114
      %p120 = scmp.eq.s32.totalorder %s17, 0
      %p121 = por %p119, %p120
      %p122 = scmp.ne.s32.totalorder %s111, %s114
      %p123 = scmp.eq.s32.totalorder %s22, 1
      %p124 = por %p122, %p123
      %p125 = scmp.ne.s32.totalorder %s114, %s115
      %p126 = scmp.eq.s32.totalorder %s22, 0
      %p127 = por %p125, %p126
      %p128 = scmp.ne.s32.totalorder %s114, %s115
      %p129 = scmp.eq.s32.totalorder %s23, 1
      %p130 = por %p128, %p129
      %p132 = scmp.ne.s32.totalorder %s115, %s131
      %p133 = scmp.eq.s32.totalorder %s23, 0
      %p134 = por %p132, %p133
      %p135 = scmp.le.s32.totalorder 1, %s17
      %p136 = scmp.lt.s32.totalorder %s17, 3
      %p137 = pnand %p135, %p136
      %p138 = pneg %p137
      // Predicated region
      $region9: #{tpu_custom_call.1} parent=5 // pred_check
        _
      $region10: #{tpu_custom_call.1} parent=5 // pred_check_branch
        %140 = sbr.rel (%p137) target = $region12
      $region11: #{tpu_custom_call.1} parent=5 // pred_region
        %s141 = ssub.s32 %s17, 1
        // Predicated region
        $region13: #{tpu_custom_call.1} parent=11 // pred_check
          %p142 = pneg %p78
        $region14: #{tpu_custom_call.1} parent=11 // pred_check_branch
          %144 = sbr.rel (%p142) target = $region16
        $region15: #{tpu_custom_call.1} parent=11 // pred_region
          %s146 = ssub.s32 128, 128
          %147 = vsyncadd [#allocation5], %s146
          %s149 = sshll.u32 %s1, 4
          %s150 = int_to_ptr.vmem [resolvable:$true] %s149
          %152 = dma.vmem_to_smem %s150, 128, [#allocation6], [#allocation5]
        $region16: #{tpu_custom_call.1} parent=11 // pred_fallthru
          _
        // Predicated region
        $region17: #{tpu_custom_call.1} parent=11 // pred_check
          %p153 = pneg %p99
        $region18: #{tpu_custom_call.1} parent=11 // pred_check_branch
          %155 = sbr.rel (%p153) target = $region20
        $region19: #{tpu_custom_call.1} parent=11 // pred_region
          %s157 = ssub.s32 16, 16
          %158 = vsyncadd [#allocation8], %s157
          %s160 = sshll.u32 %s2, 4
          %s161 = int_to_ptr.vmem [resolvable:$true] %s160
          %163 = dma.vmem_to_smem %s161, 16, [#allocation7], [#allocation8]
        $region20: #{tpu_custom_call.1} parent=11 // pred_fallthru
          _
      $region12: #{tpu_custom_call.1} parent=5 // pred_fallthru
        _
      %p164 = scmp.lt.s32.totalorder %s17, 2
      // Predicated region
      $region21: #{tpu_custom_call.1} parent=5 // pred_check
        %p165 = pneg %p164
      $region22: #{tpu_custom_call.1} parent=5 // pred_check_branch
        %167 = sbr.rel (%p165) target = $region24
      $region23: #{tpu_custom_call.1} parent=5 // pred_region
        // Predicated region
        $region25: #{tpu_custom_call.1} parent=23 // pred_check
          %p168 = pneg %p51
        $region26: #{tpu_custom_call.1} parent=23 // pred_check_branch
          %170 = sbr.rel (%p168) target = $region28
        $region27: #{tpu_custom_call.1} parent=23 // pred_region
          %s171 = sand.u32 %s41, 1
          %s172 = scalar_lea.sflag [#allocation3], %s171
          %s173 = sand.u32 %s41, 1
          %s174 = smul.addr %s173, 8
          %s175 = scalar_lea.vmem [#allocation2], %s174
          %s177 = ssub.s32 128, 128
          %178 = vsyncadd %s172, %s177
          %s179 = smul.addr %s24, 4
          %s180 = sadd.s32 %s25, %s179
          %s181 = smul.addr %s180, 32
          %s182 = scalar_lea.hbm %s0, %s181
          %s183 = sshll.u32 %s175, 4
          %s184 = int_to_ptr.vmem [resolvable:$true] %s183
          %189 = dma.hbm_to_vmem [thread:$0]  %s182, 128, %s184, %s172, 32, 32, 2
        $region28: #{tpu_custom_call.1} parent=23 // pred_fallthru
          _
      $region24: #{tpu_custom_call.1} parent=5 // pred_fallthru
        _
      %p190 = scmp.le.s32.totalorder 1, %s17
      %p191 = scmp.lt.s32.totalorder %s17, 3
      %p192 = pnand %p190, %p191
      %p193 = pneg %p192
      // Predicated region
      $region29: #{tpu_custom_call.1} parent=5 // pred_check
        _
      $region30: #{tpu_custom_call.1} parent=5 // pred_check_branch
        %195 = sbr.rel (%p192) target = $region32
      $region31: #{tpu_custom_call.1} parent=5 // pred_region
        %s196 = ssub.s32 %s17, 1
        %s197 = sand.u32 %s44, 1
        %s198 = scalar_lea.sflag [#allocation3], %s197
        %s199 = sand.u32 %s44, 1
        %s200 = smul.addr %s199, 8
        %s201 = scalar_lea.vmem [#allocation2], %s200
        // Predicated region
        $region33: #{tpu_custom_call.1} parent=31 // pred_check
          %p202 = pneg %p57
        $region34: #{tpu_custom_call.1} parent=31 // pred_check_branch
          %204 = sbr.rel (%p202) target = $region36
        $region35: #{tpu_custom_call.1} parent=31 // pred_region
          %205 = dma.done %s198, 128
        $region36: #{tpu_custom_call.1} parent=31 // pred_fallthru
          _
        // Predicated region
        $region37: #{tpu_custom_call.1} parent=31 // pred_check
          %p206 = pneg %p78
        $region38: #{tpu_custom_call.1} parent=31 // pred_check_branch
          %208 = sbr.rel (%p206) target = $region40
        $region39: #{tpu_custom_call.1} parent=31 // pred_region
          %209 = dma.done [#allocation5], 128
        $region40: #{tpu_custom_call.1} parent=31 // pred_fallthru
          _
        // Predicated region
        $region41: #{tpu_custom_call.1} parent=31 // pred_check
          %p210 = pneg %p99
        $region42: #{tpu_custom_call.1} parent=31 // pred_check_branch
          %212 = sbr.rel (%p210) target = $region44
        $region43: #{tpu_custom_call.1} parent=31 // pred_region
          %213 = dma.done [#allocation8], 16
        $region44: #{tpu_custom_call.1} parent=31 // pred_fallthru
          _
        %214 = sfence
        %s215 = sand.u32 %s44, 1
        %s216 = scalar_lea.sflag [#allocation3], %s215
        %s217 = sand.u32 %s44, 1
        %s218 = smul.addr %s217, 8
        %s219 = scalar_lea.vmem [#allocation2], %s218
        %p220 = pneg %p57
        %p221 = pneg %p54
        %p222 = pneg %p78
        %p223 = pneg %p75
        %p224 = pneg %p99
        %p225 = pneg %p96
        %p226 = pneg %p127
        %p227 = pneg %p124
        %s228 = sand.u32 %s114, 1
        %s229 = scalar_lea.sflag [#allocation4], %s228
        %s230 = sand.u32 %s114, 1
        %s231 = smul.addr %s230, 16
        %s232 = scalar_lea.vmem [#allocation9], %s231
        %s233 = sld [smem:[#allocation6]]
        %s234 = sld [smem:[#allocation6 + $0x1]]
        %s235 = sld [smem:[#allocation6 + $0x2]]
        %s236 = sld [smem:[#allocation6 + $0x3]]
        %s237 = sld [smem:[#allocation6 + $0x80]]
        %s238 = sld [smem:[#allocation6 + $0x81]]
        %s239 = sld [smem:[#allocation6 + $0x82]]
        %s240 = sld [smem:[#allocation6 + $0x83]]
        %s241 = sld [smem:[#allocation6 + $0x100]]
        %s242 = sld [smem:[#allocation6 + $0x101]]
        %s243 = sld [smem:[#allocation6 + $0x102]]
        %s244 = sld [smem:[#allocation6 + $0x103]]
        %s245 = sld [smem:[#allocation6 + $0x180]]
        %s246 = sld [smem:[#allocation6 + $0x181]]
        %s247 = sld [smem:[#allocation6 + $0x182]]
        %s248 = sld [smem:[#allocation6 + $0x183]]
        %s249 = sld [smem:[#allocation6 + $0x200]]
        %s250 = sld [smem:[#allocation6 + $0x201]]
        %s251 = sld [smem:[#allocation6 + $0x202]]
        %s252 = sld [smem:[#allocation6 + $0x203]]
        %s253 = sld [smem:[#allocation6 + $0x280]]
        %s254 = sld [smem:[#allocation6 + $0x281]]
        %s255 = sld [smem:[#allocation6 + $0x282]]
        %s256 = sld [smem:[#allocation6 + $0x283]]
        %s257 = sld [smem:[#allocation6 + $0x300]]
        %s258 = sld [smem:[#allocation6 + $0x301]]
        %s259 = sld [smem:[#allocation6 + $0x302]]
        %s260 = sld [smem:[#allocation6 + $0x303]]
        %s261 = sld [smem:[#allocation6 + $0x380]]
        %s262 = sld [smem:[#allocation6 + $0x381]]
        %s263 = sld [smem:[#allocation6 + $0x382]]
        %s264 = sld [smem:[#allocation6 + $0x383]]
        %s265 = sld [smem:[#allocation7]]
        %s266 = sld [smem:[#allocation7 + $0x1]]
        %s267 = sld [smem:[#allocation7 + $0x2]]
        %s268 = sld [smem:[#allocation7 + $0x3]]
        %s269 = sld [smem:[#allocation7 + $0x4]]
        %s270 = sld [smem:[#allocation7 + $0x5]]
        %s271 = sld [smem:[#allocation7 + $0x6]]
        %s272 = sld [smem:[#allocation7 + $0x7]]
        %v273 = vld [vmem:[%s201] sm:$0x3]
        %s274 = scalar_lea.vmem %s201, 2 [#allocation2]
        %v275 = vld [vmem:[%s274] sm:$0x3]
        %s276 = scalar_lea.vmem %s201, 4 [#allocation2]
        %v277 = vld [vmem:[%s276] sm:$0x3]
        %s278 = scalar_lea.vmem %s201, 6 [#allocation2]
        %v279 = vld [vmem:[%s278] sm:$0x3]
        %v280 = vstv %s233
        %v281 = vmul.f32 %v273, %v280
        %v282 = vstv %s234
        %v283 = vmul.f32 %v275, %v282
        %v284 = vadd.f32 %v281, %v283
        %v285 = vstv %s235
        %v286 = vmul.f32 %v277, %v285
        %v287 = vadd.f32 %v284, %v286
        %v288 = vstv %s236
        %v289 = vmul.f32 %v279, %v288
        %v290 = vadd.f32 %v287, %v289
        %v291 = vstv %s265
        %v292 = vadd.f32 %v290, %v291
        %v293 = vmax.f32 %v292, 0.0
        %294 = vst [vmem:[%s232] sm:$0x3] %v293
        %v295 = vstv %s237
        %v296 = vmul.f32 %v273, %v295
        %v297 = vstv %s238
        %v298 = vmul.f32 %v275, %v297
        %v299 = vadd.f32 %v296, %v298
        %v300 = vstv %s239
        %v301 = vmul.f32 %v277, %v300
        %v302 = vadd.f32 %v299, %v301
        %v303 = vstv %s240
        %v304 = vmul.f32 %v279, %v303
        %v305 = vadd.f32 %v302, %v304
        %v306 = vstv %s266
        %v307 = vadd.f32 %v305, %v306
        %v308 = vmax.f32 %v307, 0.0
        %s309 = scalar_lea.vmem %s232, 2 [#allocation9]
        %310 = vst [vmem:[%s309] sm:$0x3] %v308
        %v311 = vstv %s241
        %v312 = vmul.f32 %v273, %v311
        %v313 = vstv %s242
        %v314 = vmul.f32 %v275, %v313
        %v315 = vadd.f32 %v312, %v314
        %v316 = vstv %s243
        %v317 = vmul.f32 %v277, %v316
        %v318 = vadd.f32 %v315, %v317
        %v319 = vstv %s244
        %v320 = vmul.f32 %v279, %v319
        %v321 = vadd.f32 %v318, %v320
        %v322 = vstv %s267
        %v323 = vadd.f32 %v321, %v322
        %v324 = vmax.f32 %v323, 0.0
        %s325 = scalar_lea.vmem %s232, 4 [#allocation9]
        %326 = vst [vmem:[%s325] sm:$0x3] %v324
        %v327 = vstv %s245
        %v328 = vmul.f32 %v273, %v327
        %v329 = vstv %s246
        %v330 = vmul.f32 %v275, %v329
        %v331 = vadd.f32 %v328, %v330
        %v332 = vstv %s247
        %v333 = vmul.f32 %v277, %v332
        %v334 = vadd.f32 %v331, %v333
        %v335 = vstv %s248
        %v336 = vmul.f32 %v279, %v335
        %v337 = vadd.f32 %v334, %v336
        %v338 = vstv %s268
        %v339 = vadd.f32 %v337, %v338
        %v340 = vmax.f32 %v339, 0.0
        %s341 = scalar_lea.vmem %s232, 6 [#allocation9]
        %342 = vst [vmem:[%s341] sm:$0x3] %v340
        %v343 = vstv %s249
        %v344 = vmul.f32 %v273, %v343
        %v345 = vstv %s250
        %v346 = vmul.f32 %v275, %v345
        %v347 = vadd.f32 %v344, %v346
        %v348 = vstv %s251
        %v349 = vmul.f32 %v277, %v348
        %v350 = vadd.f32 %v347, %v349
        %v351 = vstv %s252
        %v352 = vmul.f32 %v279, %v351
        %v353 = vadd.f32 %v350, %v352
        %v354 = vstv %s269
        %v355 = vadd.f32 %v353, %v354
        %v356 = vmax.f32 %v355, 0.0
        %s357 = scalar_lea.vmem %s232, 8 [#allocation9]
        %358 = vst [vmem:[%s357] sm:$0x3] %v356
        %v359 = vstv %s253
        %v360 = vmul.f32 %v273, %v359
        %v361 = vstv %s254
        %v362 = vmul.f32 %v275, %v361
        %v363 = vadd.f32 %v360, %v362
        %v364 = vstv %s255
        %v365 = vmul.f32 %v277, %v364
        %v366 = vadd.f32 %v363, %v365
        %v367 = vstv %s256
        %v368 = vmul.f32 %v279, %v367
        %v369 = vadd.f32 %v366, %v368
        %v370 = vstv %s270
        %v371 = vadd.f32 %v369, %v370
        %v372 = vmax.f32 %v371, 0.0
        %s373 = scalar_lea.vmem %s232, 10 [#allocation9]
        %374 = vst [vmem:[%s373] sm:$0x3] %v372
        %v375 = vstv %s257
        %v376 = vmul.f32 %v273, %v375
        %v377 = vstv %s258
        %v378 = vmul.f32 %v275, %v377
        %v379 = vadd.f32 %v376, %v378
        %v380 = vstv %s259
        %v381 = vmul.f32 %v277, %v380
        %v382 = vadd.f32 %v379, %v381
        %v383 = vstv %s260
        %v384 = vmul.f32 %v279, %v383
        %v385 = vadd.f32 %v382, %v384
        %v386 = vstv %s271
        %v387 = vadd.f32 %v385, %v386
        %v388 = vmax.f32 %v387, 0.0
        %s389 = scalar_lea.vmem %s232, 12 [#allocation9]
        %390 = vst [vmem:[%s389] sm:$0x3] %v388
        %v391 = vstv %s261
        %v392 = vmul.f32 %v273, %v391
        %v393 = vstv %s262
        %v394 = vmul.f32 %v275, %v393
        %v395 = vadd.f32 %v392, %v394
        %v396 = vstv %s263
        %v397 = vmul.f32 %v277, %v396
        %v398 = vadd.f32 %v395, %v397
        %v399 = vstv %s264
        %v400 = vmul.f32 %v279, %v399
        %v401 = vadd.f32 %v398, %v400
        %v402 = vstv %s272
        %v403 = vadd.f32 %v401, %v402
        %v404 = vmax.f32 %v403, 0.0
        %s405 = scalar_lea.vmem %s232, 14 [#allocation9]
        %406 = vst [vmem:[%s405] sm:$0x3] %v404
        %s407 = sand.u32 %s114, 1
        %s408 = scalar_lea.sflag [#allocation4], %s407
        %s409 = sand.u32 %s114, 1
        %s410 = smul.addr %s409, 16
        %s411 = scalar_lea.vmem [#allocation9], %s410
        // Predicated region
        $region45: #{tpu_custom_call.1} parent=31 // pred_check
          %p412 = pneg %p124
        $region46: #{tpu_custom_call.1} parent=31 // pred_check_branch
          %414 = sbr.rel (%p412) target = $region48
        $region47: #{tpu_custom_call.1} parent=31 // pred_region
          %s416 = ssub.s32 256, 256
          %417 = vsyncadd %s408, %s416
          %s418 = smul.addr %s26, 8
          %s419 = sadd.s32 %s27, %s418
          %s420 = smul.addr %s419, 32
          %s421 = scalar_lea.hbm %s3, %s420
          %s422 = sshll.u32 %s411, 4
          %s423 = int_to_ptr.vmem [resolvable:$true] %s422
          %428 = dma.vmem_to_hbm [thread:$0]  %s423, 256, %s421, %s408, 32, 32, 2
        $region48: #{tpu_custom_call.1} parent=31 // pred_fallthru
          _
      $region32: #{tpu_custom_call.1} parent=5 // pred_fallthru
        _
      %p429 = scmp.le.s32.totalorder 2, %s17
      // Predicated region
      $region49: #{tpu_custom_call.1} parent=5 // pred_check
        %p430 = pneg %p429
      $region50: #{tpu_custom_call.1} parent=5 // pred_check_branch
        %432 = sbr.rel (%p430) target = $region52
      $region51: #{tpu_custom_call.1} parent=5 // pred_region
        %s433 = ssub.s32 %s17, 2
        // Predicated region
        $region53: #{tpu_custom_call.1} parent=51 // pred_check
          %p434 = pneg %p130
        $region54: #{tpu_custom_call.1} parent=51 // pred_check_branch
          %436 = sbr.rel (%p434) target = $region56
        $region55: #{tpu_custom_call.1} parent=51 // pred_region
          %s437 = sand.u32 %s115, 1
          %s438 = scalar_lea.sflag [#allocation4], %s437
          %s439 = sand.u32 %s115, 1
          %s440 = smul.addr %s439, 16
          %s441 = scalar_lea.vmem [#allocation9], %s440
          %442 = dma.done %s438, 256
        $region56: #{tpu_custom_call.1} parent=51 // pred_fallthru
          _
      $region52: #{tpu_custom_call.1} parent=5 // pred_fallthru
        _
    $region6: #{tpu_custom_call.1} parent=1 // loop_footer
      %s21 = sadd.s32 1, %s17
    $region7: #{tpu_custom_call.1} parent=1 // loop_footer_branch
      %16 = sbr.rel target = $region3
    $region8: #{tpu_custom_call.1} parent=1 // loop_exit
      _
    %443 = vsyncpa [#allocation3], 1
    %s444 = scalar_lea.sflag [#allocation3], 1
    %445 = vsyncpa %s444, 1
    %446 = vsyncpa [#allocation4], 1
    %s447 = scalar_lea.sflag [#allocation4], 1
    %448 = vsyncpa %s447, 1
    %449 = vsyncpa [#allocation5], 1
    %s450 = scalar_lea.sflag [#allocation5], 1
    %451 = vsyncpa %s450, 1
    %452 = vsyncpa [#allocation8], 1

</llo_original>
